<compile_context>
chip_gen: v5e
topology: v5e:2x2
jax: 0.10.0
libtpu: 0.0.40
codegen_flags: <defaults>
</compile_context>

<pallas_src>
from math import sqrt

import jax
import jax.numpy as jnp
from jax.experimental import pallas as pl
from jax.experimental.pallas import tpu as pltpu


def _round_up(x, m):
    return (x + m - 1) // m * m


def _pick_tm(M):
    if M >= 2048:
        return 512
    if M >= 512:
        return 256
    if M >= 256:
        return 128
    return _round_up(M, 8)          # single full-extent block


def _pick_tn(N):
    n128 = _round_up(N, 128)
    if n128 >= 256 and n128 % 256 == 0:
        return 256                  # match 2x256x256 MXU on v6e/v7x
    return 128


def _pick_tk(K):
    if K <= 2048:
        return _round_up(K, 16)     # single K block (bf16 sublane granule)
    return 512


def _matmul_scale_bias_kernel(scale_ref, a_ref, b_ref, bias_ref, o_ref, acc_ref):
    # a_ref:(TM,TK) bf16   b_ref:(TK,TN) bf16   bias_ref:(1,TN) f32
    # scale_ref:(1,1) f32 in SMEM                o_ref:(TM,TN)  acc_ref f32
    @pl.when(pl.program_id(2) == 0)
    def _():
        acc_ref[...] = jnp.zeros_like(acc_ref)

    acc_ref[...] += jnp.dot(a_ref[...], b_ref[...],
                            preferred_element_type=jnp.float32)

    @pl.when(pl.program_id(2) == pl.num_programs(2) - 1)
    def _():
        o_ref[...] = (acc_ref[...] * scale_ref[0, 0]
                      + bias_ref[...]).astype(o_ref.dtype)


def _matmul_scale_bias(a, b, bias_row, scale, out_dtype):
    """out = (a @ b) * scale + bias_row   with a:(M,K), b:(K,N), bias:(N,)."""
    M, K = a.shape
    K2, N = b.shape
    assert K == K2

    tm, tn, tk = _pick_tm(M), _pick_tn(N), _pick_tk(K)
    M_pad = _round_up(M, tm)
    N_pad = _round_up(N, tn)
    K_pad = _round_up(K, tk)

    # bf16 operands for the MXU; cast first, then pad (half the pad traffic).
    a_p = jnp.pad(a.astype(jnp.bfloat16), ((0, M_pad - M), (0, K_pad - K)))
    b_p = jnp.pad(b.astype(jnp.bfloat16), ((0, K_pad - K), (0, N_pad - N)))
    bias_p = jnp.pad(bias_row.reshape(1, N).astype(jnp.float32),
                     ((0, 0), (0, N_pad - N)))
    scale_arr = jnp.array([[scale]], dtype=jnp.float32)

    out_p = pl.pallas_call(
        _matmul_scale_bias_kernel,
        out_shape=jax.ShapeDtypeStruct((M_pad, N_pad), out_dtype),
        grid_spec=pltpu.PrefetchScalarGridSpec(
            num_scalar_prefetch=0,
            grid=(M_pad // tm, N_pad // tn, K_pad // tk),
            in_specs=[
                pl.BlockSpec(memory_space=pltpu.MemorySpace.SMEM),    # scale
                pl.BlockSpec((tm, tk), lambda i, j, k: (i, k)),       # A
                pl.BlockSpec((tk, tn), lambda i, j, k: (k, j)),       # B
                pl.BlockSpec((1, tn), lambda i, j, k: (0, j)),        # bias
            ],
            out_specs=pl.BlockSpec((tm, tn), lambda i, j, k: (i, j)),
            scratch_shapes=[pltpu.VMEM((tm, tn), jnp.float32)],
        ),
        compiler_params=pltpu.CompilerParams(
            dimension_semantics=("parallel", "parallel", "arbitrary")),
    )(scale_arr, a_p, b_p, bias_p)

    return out_p[:M, :N]


def equalized_conv2d(x, weight, bias=None, stride=1, pad=0, scale=None):
    """Matches PyTorch equalized_conv2d.forward:
         conv2d(x, weight * scale, bias, stride=stride, padding=pad)
       x: (N, C_in, H, W), weight: (C_out, C_in, kH, kW), bias: (C_out,) or None.
    """
    N, C_in, H, W = x.shape
    C_out, C_in_w, kH, kW = weight.shape
    assert C_in == C_in_w
    if scale is None:
        scale = sqrt(2.0) / sqrt(C_in * kH * kW)

    OH = (H + 2 * pad - kH) // stride + 1
    OW = (W + 2 * pad - kW) // stride + 1
    K = C_in * kH * kW

    # --- im2col, already in GEMM-friendly layout ------------------------------
    # NHWC view + spatial pad, then strided window slices concatenated on the
    # channel axis -> patches come out directly as (N, OH, OW, kH*kW*C_in).
    # No transpose over the kH*kW-expanded intermediate; the (tiny) weight
    # matrix is re-ordered to the matching (kh, kw, c_in) flattening instead.
    # TODO(synk): fold the patch gather into the kernel (kh*kw grid axis with
    # shifted-window DMAs) to remove the kH*kW x HBM expansion entirely.
    x_nhwc = jnp.transpose(x, (0, 2, 3, 1))
    xp = jnp.pad(x_nhwc, ((0, 0), (pad, pad), (pad, pad), (0, 0)))
    h_span = stride * (OH - 1) + 1
    w_span = stride * (OW - 1) + 1
    cols = [xp[:, i:i + h_span:stride, j:j + w_span:stride, :]
            for i in range(kH) for j in range(kW)]
    patches = cols[0] if len(cols) == 1 else jnp.concatenate(cols, axis=-1)
    a = patches.reshape(N * OH * OW, K)                      # free reshape
    b = jnp.transpose(weight, (2, 3, 1, 0)).reshape(K, C_out)

    if bias is None:
        bias_row = jnp.zeros((C_out,), dtype=jnp.float32)
    else:
        bias_row = bias.astype(jnp.float32)

    out2d = _matmul_scale_bias(a, b, bias_row, float(scale), x.dtype)
    # PyTorch returns NCHW; the reshape is free, only the transpose costs.
    return out2d.reshape(N, OH, OW, C_out).transpose(0, 3, 1, 2)


def _reference(x, weight, bias, stride, pad, scale):
    out = jax.lax.conv_general_dilated(
        x, weight * scale,
        window_strides=(stride, stride),
        padding=[(pad, pad), (pad, pad)],
        dimension_numbers=("NCHW", "OIHW", "NCHW"))
    if bias is not None:
        out = out + bias[None, :, None, None]
    return out


if __name__ == "__main__":
    key = jax.random.PRNGKey(0)
    k1, k2, k3 = jax.random.split(key, 3)

    N, C_in, C_out, H, W, ksize = 2, 4, 8, 16, 16, 3
    stride, pad = 1, 1

    x = jax.random.normal(k1, (N, C_in, H, W), dtype=jnp.float32)
    weight = jax.random.normal(k2, (C_out, C_in, ksize, ksize), dtype=jnp.float32)
    bias = 0.1 * jax.random.normal(k3, (C_out,), dtype=jnp.float32)

    scale = sqrt(2.0) / sqrt(C_in * ksize * ksize)

    out = equalized_conv2d(x, weight, bias, stride=stride, pad=pad)
    out = jax.block_until_ready(out)

    ref = _reference(x, weight, bias, stride, pad, scale)
    assert out.shape == ref.shape, (out.shape, ref.shape)

    # bf16 MXU operands with f32 accumulation: comfortably within tolerance.
    max_err = float(jnp.max(jnp.abs(out - ref)))
    ref_mag = float(jnp.max(jnp.abs(ref)))
    assert max_err <= 3e-2 * ref_mag + 1e-5, f"mismatch: max abs err {max_err}"

    print("KERNEL_OK")
</pallas_src>

<mosaic_0001>
module attributes {stable_mosaic.version = 11 : i64} {
  func.func @_matmul_scale_bias_kernel(%arg0: i32, %arg1: i32, %arg2: i32, %arg3: memref<1x1xf32, #tpu.memory_space<smem>>, %arg4: memref<256x48xbf16, #tpu.memory_space<vmem>>, %arg5: memref<48x128xbf16, #tpu.memory_space<vmem>>, %arg6: memref<1x128xf32, #tpu.memory_space<vmem>>, %arg7: memref<256x128xf32, #tpu.memory_space<vmem>>, %arg8: memref<256x128xf32, #tpu.memory_space<vmem>>) attributes {dimension_semantics = [#tpu.dimension_semantics<parallel>, #tpu.dimension_semantics<parallel>, #tpu.dimension_semantics<arbitrary>], iteration_bounds = array<i64: 2, 1, 1>, scalar_prefetch = 0 : i64, scratch_operands = 1 : i64, tpu.core_type = #tpu.core_type<tc>, window_params = [{transform_indices = @transform_0, window_bounds = array<i64: 1, 1>}, {transform_indices = @transform_1, window_bounds = array<i64: 256, 48>}, {transform_indices = @transform_2, window_bounds = array<i64: 48, 128>}, {transform_indices = @transform_3, window_bounds = array<i64: 1, 128>}, {transform_indices = @transform_4, window_bounds = array<i64: 256, 128>}]} {
    %c0_i32 = arith.constant 0 : i32
    %0 = arith.cmpi eq, %arg2, %c0_i32 : i32
    %1 = arith.extui %0 : i1 to i32
    %c0_i32_0 = arith.constant 0 : i32
    %2 = arith.cmpi ne, %1, %c0_i32_0 : i32
    scf.if %2 {
      %cst_10 = arith.constant 0.000000e+00 : f32
      %12 = vector.broadcast %cst_10 : f32 to vector<256x128xf32>
      %c0_11 = arith.constant 0 : index
      %c0_12 = arith.constant 0 : index
      %13 = vector.load %arg8[%c0_11, %c0_12] : memref<256x128xf32, #tpu.memory_space<vmem>>, vector<256x128xf32>
      tpu.vector_store %arg8[%c0_11, %c0_12], %12 {strides = array<i32>} : memref<256x128xf32, #tpu.memory_space<vmem>>, vector<256x128xf32>,
    } else {
    }
    %c0 = arith.constant 0 : index
    %c0_1 = arith.constant 0 : index
    %3 = vector.load %arg8[%c0, %c0_1] : memref<256x128xf32, #tpu.memory_space<vmem>>, vector<256x128xf32>
    %c0_2 = arith.constant 0 : index
    %c0_3 = arith.constant 0 : index
    %4 = vector.load %arg4[%c0_2, %c0_3] : memref<256x48xbf16, #tpu.memory_space<vmem>>, vector<256x48xbf16>
    %c0_4 = arith.constant 0 : index
    %c0_5 = arith.constant 0 : index
    %5 = vector.load %arg5[%c0_4, %c0_5] : memref<48x128xbf16, #tpu.memory_space<vmem>>, vector<48x128xbf16>
    %cst = arith.constant dense<0.000000e+00> : vector<256x128xf32>
    %6 = tpu.matmul %4, %5, %cst {dimension_numbers = #tpu.dot_dimension_numbers<[1], [0], [0], [1], [0, 0, 1, 1], [], []>} : vector<256x48xbf16>, vector<48x128xbf16>, vector<256x128xf32> -> vector<256x128xf32>
    %7 = arith.addf %3, %6 : vector<256x128xf32>
    %c0_6 = arith.constant 0 : index
    %c0_7 = arith.constant 0 : index
    %8 = vector.load %arg8[%c0_6, %c0_7] : memref<256x128xf32, #tpu.memory_space<vmem>>, vector<256x128xf32>
    tpu.vector_store %arg8[%c0_6, %c0_7], %7 {strides = array<i32>} : memref<256x128xf32, #tpu.memory_space<vmem>>, vector<256x128xf32>,
    %c0_i32_8 = arith.constant 0 : i32
    %9 = arith.cmpi eq, %arg2, %c0_i32_8 : i32
    %10 = arith.extui %9 : i1 to i32
    %c0_i32_9 = arith.constant 0 : i32
    %11 = arith.cmpi ne, %10, %c0_i32_9 : i32
    scf.if %11 {
      %c0_10 = arith.constant 0 : index
      %c0_11 = arith.constant 0 : index
      %12 = vector.load %arg8[%c0_10, %c0_11] : memref<256x128xf32, #tpu.memory_space<vmem>>, vector<256x128xf32>
      %c0_12 = arith.constant 0 : index
      %c0_13 = arith.constant 0 : index
      %13 = memref.load %arg3[%c0_12, %c0_13] : memref<1x1xf32, #tpu.memory_space<smem>>
      %14 = vector.broadcast %13 : f32 to vector<256x128xf32>
      %15 = arith.mulf %12, %14 : vector<256x128xf32>
      %c0_14 = arith.constant 0 : index
      %c0_15 = arith.constant 0 : index
      %16 = vector.load %arg6[%c0_14, %c0_15] : memref<1x128xf32, #tpu.memory_space<vmem>>, vector<1x128xf32>
      %17 = vector.broadcast %16 : vector<1x128xf32> to vector<256x128xf32>
      %18 = arith.addf %15, %17 : vector<256x128xf32>
      %c0_16 = arith.constant 0 : index
      %c0_17 = arith.constant 0 : index
      %19 = vector.load %arg7[%c0_16, %c0_17] : memref<256x128xf32, #tpu.memory_space<vmem>>, vector<256x128xf32>
      tpu.vector_store %arg7[%c0_16, %c0_17], %18 {strides = array<i32>} : memref<256x128xf32, #tpu.memory_space<vmem>>, vector<256x128xf32>,
    } else {
    }
    return
  }
  func.func @transform_0(%arg0: i32, %arg1: i32, %arg2: i32) -> (i32, i32) {
    %c0_i32 = arith.constant 0 : i32
    %c0_i32_0 = arith.constant 0 : i32
    %c0_i32_1 = arith.constant 0 : i32
    return %c0_i32, %c0_i32_0 : i32, i32
  }
  func.func @transform_1(%arg0: i32, %arg1: i32, %arg2: i32) -> (i32, i32) {
    %c0_i32 = arith.constant 0 : i32
    return %arg0, %arg2 : i32, i32
  }
  func.func @transform_2(%arg0: i32, %arg1: i32, %arg2: i32) -> (i32, i32) {
    %c0_i32 = arith.constant 0 : i32
    return %arg2, %arg1 : i32, i32
  }
  func.func @transform_3(%arg0: i32, %arg1: i32, %arg2: i32) -> (i32, i32) {
    %c0_i32 = arith.constant 0 : i32
    %c0_i32_0 = arith.constant 0 : i32
    return %c0_i32, %arg1 : i32, i32
  }
  func.func @transform_4(%arg0: i32, %arg1: i32, %arg2: i32) -> (i32, i32) {
    %c0_i32 = arith.constant 0 : i32
    return %arg0, %arg1 : i32, i32
  }
}

</mosaic_0001>

<llo_original>
// kernel: tpu_custom_call.1
$region0: #{tpu_custom_call.1}
  #allocation0 [shape = 'u32[]', space=smem, size = 0x4, offset = 0x4, fixed_abs, tag = 'smem constant byte address 0x4 - core index']
  #allocation1 [shape = 'u32[72,128]{1,0:T(1,128)}', space=vmem, size = 0x9000, scoped, tag = 'internal scratch']
  #allocation2 [shape = 'f32[256,128]{1,0:T(8,128)}', space=vmem, size = 0x20000, scoped, tag = 'scratch operand']
  #allocation3 [shape = 'f32[1,1]{1,0:T(1,128)S(6)}', space=smem, size = 0x200, scoped, tag = 'scoped memory for tpu_custom_call.1']
  %s0 = inlined_call_operand.<no memory space> [shape: f32[1,1], index: 0, kind: input, shape index: {}]
  %s1 = inlined_call_operand.vmem [shape: bf16[512,48], index: 1, kind: input, shape index: {}]
  %s2 = inlined_call_operand.vmem [shape: bf16[48,128], index: 2, kind: input, shape index: {}]
  %s3 = inlined_call_operand.vmem [shape: f32[1,128], index: 3, kind: input, shape index: {}]
  %s4 = inlined_call_operand.hbm [shape: f32[512,128], index: 4, kind: output, shape index: {}]
  %s5 = sld [smem:[#allocation0]]
  $region57: #{tpu_custom_call.1} parent=0
    _
  %s7 = ssub.s32 1, %s5
  %s8 = scalar_select 0, %s7, %s5
  %9 = sst [smem:[#allocation3]] %s0
  $region1: #{tpu_custom_call.1} parent=0
    #allocation4 [shape = 'u8[262144]{0}', space=vmem, size = 0x40000, scoped, tag = 'output window, operand 0']
    #allocation5 [shape = 's32[2]{0}', space=sflag, size = 0x8, scoped, tag = 'scoped memory for tpu_custom_call.1']
    %10 = vsyncpa [#allocation5], 0
    %s11 = scalar_lea.sflag [#allocation5], 1
    %12 = vsyncpa %s11, 0
    loop: start=0, step=1, limit=4
    $region2: #{tpu_custom_call.1} parent=1 // loop_pre_header
      _
    $region3: #{tpu_custom_call.1} parent=1 // loop_header
      %s14 = sphi 0, %s18
      %p15 = scmp.ge.s32.totalorder %s14, 4
      %s21 = sphi 0, %s40
      %s22 = sphi 0, %s36
      %s23 = sphi 0, %s32
      %s24 = sphi 0, %s21
      %s25 = sphi 0, %s22
      %s26 = sphi 0, %s23
      %s27 = sphi 0, %s24
      %s28 = sphi 0, %s25
      %s29 = sphi 0, %s26
      %s41 = sphi 0, %s41
      %s43 = sphi 0, %s41
      %s44 = sphi 0, %s43
      %s58 = sphi 0, %s44
      %s66 = sphi 0, %s68
      %s69 = sphi 0, %s66
      %s70 = sphi 0, %s69
      %s86 = sphi 0, %s70
      %s94 = sphi 0, %s96
      %s97 = sphi 0, %s94
      %s98 = sphi 0, %s97
      %s114 = sphi 0, %s98
      %s120 = sphi 0, %s122
      %s123 = sphi 0, %s120
      %s124 = sphi 0, %s123
      %s140 = sphi 0, %s124
      %s148 = sphi 0, %s150
      %s151 = sphi 0, %s148
      %s152 = sphi 0, %s151
      %s168 = sphi 0, %s152
    $region4: #{tpu_custom_call.1} parent=1 // loop_header_branch
      %17 = sbr.rel (%p15) target = $region8
    $region5: #{tpu_custom_call.1} parent=1 // loop_body
      %s19 = ssub.s32 %s14, 1
      %s20 = ssub.s32 %s14, 2
      %s30 = sadd.s32 1, %s23
      %p31 = scmp.ge.s32.totalorder %s30, 1
      %s32 = scalar_select %p31, 0, %s30
      %s33 = sadd.s32 1, %s22
      %s34 = scalar_select %p31, %s33, %s22
      %p35 = scmp.ge.s32.totalorder %s34, 1
      %s36 = scalar_select %p35, 0, %s34
      %s37 = sadd.s32 1, %s21
      %s38 = scalar_select %p35, %s37, %s21
      %p39 = scmp.ge.s32.totalorder %s38, 2
      %s40 = scalar_select %p39, 0, %s38
      %s42 = sadd.s32 %s41, 1
      %p45 = scmp.eq.s32.totalorder %s14, 1
      %p46 = scmp.ne.s32.totalorder %s41, %s43
      %p47 = scmp.eq.s32.totalorder %s14, 0
      %p48 = por %p46, %p47
      %p49 = scmp.ne.s32.totalorder %s41, %s43
      %p50 = scmp.eq.s32.totalorder %s19, 1
      %p51 = por %p49, %p50
      %p52 = scmp.ne.s32.totalorder %s43, %s44
      %p53 = scmp.eq.s32.totalorder %s19, 0
      %p54 = por %p52, %p53
      %p55 = scmp.ne.s32.totalorder %s43, %s44
      %p56 = scmp.eq.s32.totalorder %s20, 1
      %p57 = por %p55, %p56
      %p59 = scmp.ne.s32.totalorder %s44, %s58
      %p60 = scmp.eq.s32.totalorder %s20, 0
      %p61 = por %p59, %p60
      %s62 = ssub.s32 %s21, %s40
      %s63 = ssub.s32 %s23, %s32
      %s64 = sor.u32 %s62, %s63
      %p65 = scmp.eq.s32.totalorder %s64, 0
      %s67 = sadd.s32 %s66, 1
      %s68 = scalar_select %p65, %s66, %s67
      %p71 = pneg %p65
      %p72 = scmp.eq.s32.totalorder %s14, 1
      %p73 = por %p71, %p72
      %p74 = scmp.ne.s32.totalorder %s66, %s69
      %p75 = scmp.eq.s32.totalorder %s14, 0
      %p76 = por %p74, %p75
      %p77 = scmp.ne.s32.totalorder %s66, %s69
      %p78 = scmp.eq.s32.totalorder %s19, 1
      %p79 = por %p77, %p78
      %p80 = scmp.ne.s32.totalorder %s69, %s70
      %p81 = scmp.eq.s32.totalorder %s19, 0
      %p82 = por %p80, %p81
      %p83 = scmp.ne.s32.totalorder %s69, %s70
      %p84 = scmp.eq.s32.totalorder %s20, 1
      %p85 = por %p83, %p84
      %p87 = scmp.ne.s32.totalorder %s70, %s86
      %p88 = scmp.eq.s32.totalorder %s20, 0
      %p89 = por %p87, %p88
      %s90 = ssub.s32 %s23, %s32
      %s91 = ssub.s32 %s22, %s36
      %s92 = sor.u32 %s90, %s91
      %p93 = scmp.eq.s32.totalorder %s92, 0
      %s95 = sadd.s32 %s94, 1
      %s96 = scalar_select %p93, %s94, %s95
      %p99 = pneg %p93
      %p100 = scmp.eq.s32.totalorder %s14, 1
      %p101 = por %p99, %p100
      %p102 = scmp.ne.s32.totalorder %s94, %s97
      %p103 = scmp.eq.s32.totalorder %s14, 0
      %p104 = por %p102, %p103
      %p105 = scmp.ne.s32.totalorder %s94, %s97
      %p106 = scmp.eq.s32.totalorder %s19, 1
      %p107 = por %p105, %p106
      %p108 = scmp.ne.s32.totalorder %s97, %s98
      %p109 = scmp.eq.s32.totalorder %s19, 0
      %p110 = por %p108, %p109
      %p111 = scmp.ne.s32.totalorder %s97, %s98
      %p112 = scmp.eq.s32.totalorder %s20, 1
      %p113 = por %p111, %p112
      %p115 = scmp.ne.s32.totalorder %s98, %s114
      %p116 = scmp.eq.s32.totalorder %s20, 0
      %p117 = por %p115, %p116
      %s118 = ssub.s32 %s22, %s36
      %p119 = scmp.eq.s32.totalorder %s118, 0
      %s121 = sadd.s32 %s120, 1
      %s122 = scalar_select %p119, %s120, %s121
      %p125 = pneg %p119
      %p126 = scmp.eq.s32.totalorder %s14, 1
      %p127 = por %p125, %p126
      %p128 = scmp.ne.s32.totalorder %s120, %s123
      %p129 = scmp.eq.s32.totalorder %s14, 0
      %p130 = por %p128, %p129
      %p131 = scmp.ne.s32.totalorder %s120, %s123
      %p132 = scmp.eq.s32.totalorder %s19, 1
      %p133 = por %p131, %p132
      %p134 = scmp.ne.s32.totalorder %s123, %s124
      %p135 = scmp.eq.s32.totalorder %s19, 0
      %p136 = por %p134, %p135
      %p137 = scmp.ne.s32.totalorder %s123, %s124
      %p138 = scmp.eq.s32.totalorder %s20, 1
      %p139 = por %p137, %p138
      %p141 = scmp.ne.s32.totalorder %s124, %s140
      %p142 = scmp.eq.s32.totalorder %s20, 0
      %p143 = por %p141, %p142
      %s144 = ssub.s32 %s21, %s40
      %s145 = ssub.s32 %s22, %s36
      %s146 = sor.u32 %s144, %s145
      %p147 = scmp.eq.s32.totalorder %s146, 0
      %s149 = sadd.s32 %s148, 1
      %s150 = scalar_select %p147, %s148, %s149
      %p153 = pneg %p147
      %p154 = scmp.eq.s32.totalorder %s14, 1
      %p155 = por %p153, %p154
      %p156 = scmp.ne.s32.totalorder %s148, %s151
      %p157 = scmp.eq.s32.totalorder %s14, 0
      %p158 = por %p156, %p157
      %p159 = scmp.ne.s32.totalorder %s148, %s151
      %p160 = scmp.eq.s32.totalorder %s19, 1
      %p161 = por %p159, %p160
      %p162 = scmp.ne.s32.totalorder %s151, %s152
      %p163 = scmp.eq.s32.totalorder %s19, 0
      %p164 = por %p162, %p163
      %p165 = scmp.ne.s32.totalorder %s151, %s152
      %p166 = scmp.eq.s32.totalorder %s20, 1
      %p167 = por %p165, %p166
      %p169 = scmp.ne.s32.totalorder %s152, %s168
      %p170 = scmp.eq.s32.totalorder %s20, 0
      %p171 = por %p169, %p170
      %p172 = scmp.le.s32.totalorder 1, %s14
      %p173 = scmp.lt.s32.totalorder %s14, 3
      %p174 = pnand %p172, %p173
      %p175 = pneg %p174
      // Predicated region
      $region9: #{tpu_custom_call.1} parent=5 // pred_check
        _
      $region10: #{tpu_custom_call.1} parent=5 // pred_check_branch
        %177 = sbr.rel (%p174) target = $region12
      $region11: #{tpu_custom_call.1} parent=5 // pred_region
        %s178 = ssub.s32 %s14, 1
        // Predicated region
        $region13: #{tpu_custom_call.1} parent=11 // pred_check
          %p179 = pneg %p54
        $region14: #{tpu_custom_call.1} parent=11 // pred_check_branch
          %181 = sbr.rel (%p179) target = $region16
        $region15: #{tpu_custom_call.1} parent=11 // pred_region
          _
        $region16: #{tpu_custom_call.1} parent=11 // pred_fallthru
          _
        // Predicated region
        $region17: #{tpu_custom_call.1} parent=11 // pred_check
          %p182 = pneg %p110
        $region18: #{tpu_custom_call.1} parent=11 // pred_check_branch
          %184 = sbr.rel (%p182) target = $region20
        $region19: #{tpu_custom_call.1} parent=11 // pred_region
          %s185 = smul.u32 6, %s26
          %p186 = scmp.lt.s32.totalorder %s185, 5
          %s187 = scalar_select %p186, %s185, 5
          %p188 = scmp.lt.s32.totalorder %s25, 0
          %s189 = scalar_select %p188, %s25, 0
          %s190 = sadd.s32 %s189, %s187
          %s191 = smul.addr %s190, 4
          %s192 = scalar_lea.vmem %s2, %s191
          %s193 = smul.u32 6, %s26
        $region20: #{tpu_custom_call.1} parent=11 // pred_fallthru
          _
        // Predicated region
        $region21: #{tpu_custom_call.1} parent=11 // pred_check
          %p194 = pneg %p136
        $region22: #{tpu_custom_call.1} parent=11 // pred_check_branch
          %196 = sbr.rel (%p194) target = $region24
        $region23: #{tpu_custom_call.1} parent=11 // pred_region
          %p197 = scmp.lt.s32.totalorder %s25, 0
          %s198 = scalar_select %p197, %s25, 0
          %s199 = scalar_lea.vmem %s3, %s198
        $region24: #{tpu_custom_call.1} parent=11 // pred_fallthru
          _
      $region12: #{tpu_custom_call.1} parent=5 // pred_fallthru
        _
      %p200 = scmp.lt.s32.totalorder %s14, 2
      // Predicated region
      $region25: #{tpu_custom_call.1} parent=5 // pred_check
        %p201 = pneg %p200
      $region26: #{tpu_custom_call.1} parent=5 // pred_check_branch
        %203 = sbr.rel (%p201) target = $region28
      $region27: #{tpu_custom_call.1} parent=5 // pred_region
        // Predicated region
        $region29: #{tpu_custom_call.1} parent=27 // pred_check
          %p204 = pneg %p76
        $region30: #{tpu_custom_call.1} parent=27 // pred_check_branch
          %206 = sbr.rel (%p204) target = $region32
        $region31: #{tpu_custom_call.1} parent=27 // pred_region
          %s207 = smul.u32 32, %s21
          %p208 = scmp.lt.s32.totalorder %s207, 63
          %s209 = scalar_select %p208, %s207, 63
          %p210 = scmp.lt.s32.totalorder %s23, 0
          %s211 = scalar_select %p210, %s23, 0
          %s212 = sadd.s32 %s211, %s209
          %s213 = smul.addr %s212, 4
          %s214 = scalar_lea.vmem %s1, %s213
          %s215 = smul.u32 32, %s21
        $region32: #{tpu_custom_call.1} parent=27 // pred_fallthru
          _
      $region28: #{tpu_custom_call.1} parent=5 // pred_fallthru
        _
      %p216 = scmp.le.s32.totalorder 1, %s14
      %p217 = scmp.lt.s32.totalorder %s14, 3
      %p218 = pnand %p216, %p217
      %p219 = pneg %p218
      // Predicated region
      $region33: #{tpu_custom_call.1} parent=5 // pred_check
        _
      $region34: #{tpu_custom_call.1} parent=5 // pred_check_branch
        %221 = sbr.rel (%p218) target = $region36
      $region35: #{tpu_custom_call.1} parent=5 // pred_region
        %s222 = ssub.s32 %s14, 1
        %p223 = pneg %p54
        %p224 = pneg %p51
        %s225 = smul.u32 32, %s24
        %p226 = scmp.lt.s32.totalorder %s225, 63
        %s227 = scalar_select %p226, %s225, 63
        %p228 = scmp.lt.s32.totalorder %s26, 0
        %s229 = scalar_select %p228, %s26, 0
        %s230 = sadd.s32 %s229, %s227
        %s231 = smul.addr %s230, 4
        %s232 = scalar_lea.vmem %s1, %s231
        %p233 = pneg %p82
        %p234 = pneg %p79
        %s235 = smul.u32 6, %s26
        %p236 = scmp.lt.s32.totalorder %s235, 5
        %s237 = scalar_select %p236, %s235, 5
        %p238 = scmp.lt.s32.totalorder %s25, 0
        %s239 = scalar_select %p238, %s25, 0
        %s240 = sadd.s32 %s239, %s237
        %s241 = smul.addr %s240, 4
        %s242 = scalar_lea.vmem %s2, %s241
        %p243 = pneg %p110
        %p244 = pneg %p107
        %p245 = scmp.lt.s32.totalorder %s25, 0
        %s246 = scalar_select %p245, %s25, 0
        %s247 = scalar_lea.vmem %s3, %s246
        %p248 = pneg %p136
        %p249 = pneg %p133
        %p250 = pneg %p164
        %p251 = pneg %p161
        %s252 = sand.u32 %s151, 1
        %s253 = scalar_lea.sflag [#allocation5], %s252
        %s254 = sand.u32 %s151, 1
        %s255 = smul.addr %s254, 256
        %s256 = scalar_lea.vmem [#allocation4], %s255
        %s257 = smul.u32 32, %s24
        %p258 = scmp.lt.s32.totalorder %s257, 63
        %s259 = scalar_select %p258, %s257, 63
        %p260 = scmp.lt.s32.totalorder %s26, 0
        %s261 = scalar_select %p260, %s26, 0
        %s262 = sadd.s32 %s261, %s259
        %s263 = smul.addr %s262, 4
        %s264 = scalar_lea.vmem %s1, %s263
        %s265 = smul.u32 32, %s24
        %s266 = smul.u32 6, %s26
        %p267 = scmp.lt.s32.totalorder %s266, 5
        %s268 = scalar_select %p267, %s266, 5
        %p269 = scmp.lt.s32.totalorder %s25, 0
        %s270 = scalar_select %p269, %s25, 0
        %s271 = sadd.s32 %s270, %s268
        %s272 = smul.addr %s271, 4
        %s273 = scalar_lea.vmem %s2, %s272
        %s274 = smul.u32 6, %s26
        %p275 = scmp.lt.s32.totalorder %s25, 0
        %s276 = scalar_select %p275, %s25, 0
        %s277 = scalar_lea.vmem %s3, %s276
        %s278 = smul.u32 32, %s24
        %p280 = scmp.eq.s32.totalorder %s26, 0
        // Predicated region
        $region37: #{tpu_custom_call.1} parent=35 // pred_check
          %p281 = pneg %p280
        $region38: #{tpu_custom_call.1} parent=35 // pred_check_branch
          %283 = sbr.rel (%p281) target = $region40
        $region39: #{tpu_custom_call.1} parent=35 // pred_region
          %284 = vst [vmem:[#allocation2] sm:$0xff] 0.0
          %285 = vst [vmem:[#allocation2 + $0x8] sm:$0xff] 0.0
          %286 = vst [vmem:[#allocation2 + $0x10] sm:$0xff] 0.0
          %287 = vst [vmem:[#allocation2 + $0x18] sm:$0xff] 0.0
          %288 = vst [vmem:[#allocation2 + $0x20] sm:$0xff] 0.0
          %289 = vst [vmem:[#allocation2 + $0x28] sm:$0xff] 0.0
          %290 = vst [vmem:[#allocation2 + $0x30] sm:$0xff] 0.0
          %291 = vst [vmem:[#allocation2 + $0x38] sm:$0xff] 0.0
          %292 = vst [vmem:[#allocation2 + $0x40] sm:$0xff] 0.0
          %293 = vst [vmem:[#allocation2 + $0x48] sm:$0xff] 0.0
          %294 = vst [vmem:[#allocation2 + $0x50] sm:$0xff] 0.0
          %295 = vst [vmem:[#allocation2 + $0x58] sm:$0xff] 0.0
          %296 = vst [vmem:[#allocation2 + $0x60] sm:$0xff] 0.0
          %297 = vst [vmem:[#allocation2 + $0x68] sm:$0xff] 0.0
          %298 = vst [vmem:[#allocation2 + $0x70] sm:$0xff] 0.0
          %299 = vst [vmem:[#allocation2 + $0x78] sm:$0xff] 0.0
          %300 = vst [vmem:[#allocation2 + $0x80] sm:$0xff] 0.0
          %301 = vst [vmem:[#allocation2 + $0x88] sm:$0xff] 0.0
          %302 = vst [vmem:[#allocation2 + $0x90] sm:$0xff] 0.0
          %303 = vst [vmem:[#allocation2 + $0x98] sm:$0xff] 0.0
          %304 = vst [vmem:[#allocation2 + $0xa0] sm:$0xff] 0.0
          %305 = vst [vmem:[#allocation2 + $0xa8] sm:$0xff] 0.0
          %306 = vst [vmem:[#allocation2 + $0xb0] sm:$0xff] 0.0
          %307 = vst [vmem:[#allocation2 + $0xb8] sm:$0xff] 0.0
          %308 = vst [vmem:[#allocation2 + $0xc0] sm:$0xff] 0.0
          %309 = vst [vmem:[#allocation2 + $0xc8] sm:$0xff] 0.0
          %310 = vst [vmem:[#allocation2 + $0xd0] sm:$0xff] 0.0
          %311 = vst [vmem:[#allocation2 + $0xd8] sm:$0xff] 0.0
          %312 = vst [vmem:[#allocation2 + $0xe0] sm:$0xff] 0.0
          %313 = vst [vmem:[#allocation2 + $0xe8] sm:$0xff] 0.0
          %314 = vst [vmem:[#allocation2 + $0xf0] sm:$0xff] 0.0
          %315 = vst [vmem:[#allocation2 + $0xf8] sm:$0xff] 0.0
        $region40: #{tpu_custom_call.1} parent=35 // pred_fallthru
          _
        %v316 = vld [vmem:[#allocation2] sm:$0xff]
        %v317 = vld [vmem:[#allocation2 + $0x8] sm:$0xff]
        %v318 = vld [vmem:[#allocation2 + $0x10] sm:$0xff]
        %v319 = vld [vmem:[#allocation2 + $0x18] sm:$0xff]
        %v320 = vld [vmem:[#allocation2 + $0x20] sm:$0xff]
        %v321 = vld [vmem:[#allocation2 + $0x28] sm:$0xff]
        %v322 = vld [vmem:[#allocation2 + $0x30] sm:$0xff]
        %v323 = vld [vmem:[#allocation2 + $0x38] sm:$0xff]
        %v324 = vld [vmem:[#allocation2 + $0x40] sm:$0xff]
        %v325 = vld [vmem:[#allocation2 + $0x48] sm:$0xff]
        %v326 = vld [vmem:[#allocation2 + $0x50] sm:$0xff]
        %v327 = vld [vmem:[#allocation2 + $0x58] sm:$0xff]
        %v328 = vld [vmem:[#allocation2 + $0x60] sm:$0xff]
        %v329 = vld [vmem:[#allocation2 + $0x68] sm:$0xff]
        %v330 = vld [vmem:[#allocation2 + $0x70] sm:$0xff]
        %v331 = vld [vmem:[#allocation2 + $0x78] sm:$0xff]
        %v332 = vld [vmem:[#allocation2 + $0x80] sm:$0xff]
        %v333 = vld [vmem:[#allocation2 + $0x88] sm:$0xff]
        %v334 = vld [vmem:[#allocation2 + $0x90] sm:$0xff]
        %v335 = vld [vmem:[#allocation2 + $0x98] sm:$0xff]
        %v336 = vld [vmem:[#allocation2 + $0xa0] sm:$0xff]
        %v337 = vld [vmem:[#allocation2 + $0xa8] sm:$0xff]
        %v338 = vld [vmem:[#allocation2 + $0xb0] sm:$0xff]
        %v339 = vld [vmem:[#allocation2 + $0xb8] sm:$0xff]
        %v340 = vld [vmem:[#allocation2 + $0xc0] sm:$0xff]
        %v341 = vld [vmem:[#allocation2 + $0xc8] sm:$0xff]
        %v342 = vld [vmem:[#allocation2 + $0xd0] sm:$0xff]
        %v343 = vld [vmem:[#allocation2 + $0xd8] sm:$0xff]
        %v344 = vld [vmem:[#allocation2 + $0xe0] sm:$0xff]
        %v345 = vld [vmem:[#allocation2 + $0xe8] sm:$0xff]
        %v346 = vld [vmem:[#allocation2 + $0xf0] sm:$0xff]
        %v347 = vld [vmem:[#allocation2 + $0xf8] sm:$0xff]
        %v348 = vld [vmem:[%s264] sm:$0xf]
        %v349 = vld [vmem:[%s264 + $0x4] sm:$0xf]
        %v350 = vld [vmem:[%s264 + $0x8] sm:$0xf]
        %v351 = vld [vmem:[%s264 + $0xc] sm:$0xf]
        %v352 = vld [vmem:[%s264 + $0x10] sm:$0xf]
        %v353 = vld [vmem:[%s264 + $0x14] sm:$0xf]
        %v354 = vld [vmem:[%s264 + $0x18] sm:$0xf]
        %v355 = vld [vmem:[%s264 + $0x1c] sm:$0xf]
        %v356 = vld [vmem:[%s264 + $0x20] sm:$0xf]
        %v357 = vld [vmem:[%s264 + $0x24] sm:$0xf]
        %v358 = vld [vmem:[%s264 + $0x28] sm:$0xf]
        %v359 = vld [vmem:[%s264 + $0x2c] sm:$0xf]
        %v360 = vld [vmem:[%s264 + $0x30] sm:$0xf]
        %v361 = vld [vmem:[%s264 + $0x34] sm:$0xf]
        %v362 = vld [vmem:[%s264 + $0x38] sm:$0xf]
        %v363 = vld [vmem:[%s264 + $0x3c] sm:$0xf]
        %v364 = vld [vmem:[%s264 + $0x40] sm:$0xf]
        %v365 = vld [vmem:[%s264 + $0x44] sm:$0xf]
        %v366 = vld [vmem:[%s264 + $0x48] sm:$0xf]
        %v367 = vld [vmem:[%s264 + $0x4c] sm:$0xf]
        %v368 = vld [vmem:[%s264 + $0x50] sm:$0xf]
        %v369 = vld [vmem:[%s264 + $0x54] sm:$0xf]
        %v370 = vld [vmem:[%s264 + $0x58] sm:$0xf]
        %v371 = vld [vmem:[%s264 + $0x5c] sm:$0xf]
        %v372 = vld [vmem:[%s264 + $0x60] sm:$0xf]
        %v373 = vld [vmem:[%s264 + $0x64] sm:$0xf]
        %v374 = vld [vmem:[%s264 + $0x68] sm:$0xf]
        %v375 = vld [vmem:[%s264 + $0x6c] sm:$0xf]
        %v376 = vld [vmem:[%s264 + $0x70] sm:$0xf]
        %v377 = vld [vmem:[%s264 + $0x74] sm:$0xf]
        %v378 = vld [vmem:[%s264 + $0x78] sm:$0xf]
        %v379 = vld [vmem:[%s264 + $0x7c] sm:$0xf]
        %v380 = vld [vmem:[%s273] sm:$0xf]
        %v381 = vld [vmem:[%s273 + $0x4] sm:$0xf]
        %v382 = vld [vmem:[%s273 + $0x8] sm:$0xf]
        %v383 = vld [vmem:[%s273 + $0xc] sm:$0xf]
        %v384 = vld [vmem:[%s273 + $0x10] sm:$0xf]
        %v385 = vld [vmem:[%s273 + $0x14] sm:$0xf]
        %v418 = vunpack.c.l.b16 %v348
        %v419 = vunpack.c.l.b16 %v349
        %v420 = vunpack.c.l.b16 %v350
        %v421 = vunpack.c.l.b16 %v351
        %v422 = vunpack.c.l.b16 %v352
        %v423 = vunpack.c.l.b16 %v353
        %v424 = vunpack.c.l.b16 %v354
        %v425 = vunpack.c.l.b16 %v355
        %v426 = vunpack.c.l.b16 %v356
        %v427 = vunpack.c.l.b16 %v357
        %v428 = vunpack.c.l.b16 %v358
        %v429 = vunpack.c.l.b16 %v359
        %v430 = vunpack.c.l.b16 %v360
        %v431 = vunpack.c.l.b16 %v361
        %v432 = vunpack.c.l.b16 %v362
        %v433 = vunpack.c.l.b16 %v363
        %v434 = vunpack.c.l.b16 %v364
        %v435 = vunpack.c.l.b16 %v365
        %v436 = vunpack.c.l.b16 %v366
        %v437 = vunpack.c.l.b16 %v367
        %v438 = vunpack.c.l.b16 %v368
        %v439 = vunpack.c.l.b16 %v369
        %v440 = vunpack.c.l.b16 %v370
        %v441 = vunpack.c.l.b16 %v371
        %v442 = vunpack.c.l.b16 %v372
        %v443 = vunpack.c.l.b16 %v373
        %v444 = vunpack.c.l.b16 %v374
        %v445 = vunpack.c.l.b16 %v375
        %v446 = vunpack.c.l.b16 %v376
        %v447 = vunpack.c.l.b16 %v377
        %v448 = vunpack.c.l.b16 %v378
        %v449 = vunpack.c.l.b16 %v379
        %v450 = vpack.c.b16 %v419, %v418
        %v451 = vpack.c.b16 %v421, %v420
        %v452 = vpack.c.b16 %v423, %v422
        %v453 = vpack.c.b16 %v425, %v424
        %v454 = vpack.c.b16 %v427, %v426
        %v455 = vpack.c.b16 %v429, %v428
        %v456 = vpack.c.b16 %v431, %v430
        %v457 = vpack.c.b16 %v433, %v432
        %v458 = vpack.c.b16 %v435, %v434
        %v459 = vpack.c.b16 %v437, %v436
        %v460 = vpack.c.b16 %v439, %v438
        %v461 = vpack.c.b16 %v441, %v440
        %v462 = vpack.c.b16 %v443, %v442
        %v463 = vpack.c.b16 %v445, %v444
        %v464 = vpack.c.b16 %v447, %v446
        %v465 = vpack.c.b16 %v449, %v448
        %v472 = vunpack.c.l.b16 %v380
        %v473 = vunpack.c.l.b16 %v381
        %v474 = vunpack.c.l.b16 %v382
        %v475 = vunpack.c.l.b16 %v383
        %v476 = vunpack.c.l.b16 %v384
        %v477 = vunpack.c.l.b16 %v385
        %v478 = vpack.c.b16 %v473, %v472
        %v479 = vpack.c.b16 %v475, %v474
        %v480 = vpack.c.b16 %v477, %v476
        %vm484 = vcmask 392192
        %v486 = vsel %vm484, %v450, 0
        %v489 = vsel %vm484, %v451, 0
        %v492 = vsel %vm484, %v452, 0
        %v495 = vsel %vm484, %v453, 0
        %v498 = vsel %vm484, %v454, 0
        %v501 = vsel %vm484, %v455, 0
        %v504 = vsel %vm484, %v456, 0
        %v507 = vsel %vm484, %v457, 0
        %v510 = vsel %vm484, %v458, 0
        %v513 = vsel %vm484, %v459, 0
        %v516 = vsel %vm484, %v460, 0
        %v519 = vsel %vm484, %v461, 0
        %v522 = vsel %vm484, %v462, 0
        %v525 = vsel %vm484, %v463, 0
        %v528 = vsel %vm484, %v464, 0
        %v531 = vsel %vm484, %v465, 0
        %533 = vmatpush.bf16.msra.mxu0 0
        %534 = vmatpush.bf16.msra.mxu0 0
        %535 = vmatpush.bf16.msra.mxu0 0
        %536 = vmatpush.bf16.msra.mxu0 0
        %537 = vmatpush.bf16.msra.mxu0 0
        %538 = vmatpush.bf16.msra.mxu0 %v480
        %539 = vmatpush.bf16.msra.mxu0 %v479
        %540 = vmatpush.bf16.msra.mxu0 %v478
        %541 = vmatmul.bf16.gmra.mxu0 %v486
        %v542 = vpop.f32.mrf.mxu0
        %v543 = vadd.f32 0.0, %v542
        %v544 = vpop.f32.mrf.mxu0
        %v545 = vadd.f32 0.0, %v544
        %546 = vmatmul.bf16.gmra.mxu0 %v489
        %v547 = vpop.f32.mrf.mxu0
        %v548 = vadd.f32 0.0, %v547
        %v549 = vpop.f32.mrf.mxu0
        %v550 = vadd.f32 0.0, %v549
        %551 = vmatmul.bf16.gmra.mxu0 %v492
        %v552 = vpop.f32.mrf.mxu0
        %v553 = vadd.f32 0.0, %v552
        %v554 = vpop.f32.mrf.mxu0
        %v555 = vadd.f32 0.0, %v554
        %556 = vmatmul.bf16.gmra.mxu0 %v495
        %v557 = vpop.f32.mrf.mxu0
        %v558 = vadd.f32 0.0, %v557
        %v559 = vpop.f32.mrf.mxu0
        %v560 = vadd.f32 0.0, %v559
        %561 = vmatmul.bf16.gmra.mxu0 %v498
        %v562 = vpop.f32.mrf.mxu0
        %v563 = vadd.f32 0.0, %v562
        %v564 = vpop.f32.mrf.mxu0
        %v565 = vadd.f32 0.0, %v564
        %566 = vmatmul.bf16.gmra.mxu0 %v501
        %v567 = vpop.f32.mrf.mxu0
        %v568 = vadd.f32 0.0, %v567
        %v569 = vpop.f32.mrf.mxu0
        %v570 = vadd.f32 0.0, %v569
        %571 = vmatmul.bf16.gmra.mxu0 %v504
        %v572 = vpop.f32.mrf.mxu0
        %v573 = vadd.f32 0.0, %v572
        %v574 = vpop.f32.mrf.mxu0
        %v575 = vadd.f32 0.0, %v574
        %576 = vmatmul.bf16.gmra.mxu0 %v507
        %v577 = vpop.f32.mrf.mxu0
        %v578 = vadd.f32 0.0, %v577
        %v579 = vpop.f32.mrf.mxu0
        %v580 = vadd.f32 0.0, %v579
        %581 = vmatmul.bf16.gmra.mxu0 %v510
        %v582 = vpop.f32.mrf.mxu0
        %v583 = vadd.f32 0.0, %v582
        %v584 = vpop.f32.mrf.mxu0
        %v585 = vadd.f32 0.0, %v584
        %586 = vmatmul.bf16.gmra.mxu0 %v513
        %v587 = vpop.f32.mrf.mxu0
        %v588 = vadd.f32 0.0, %v587
        %v589 = vpop.f32.mrf.mxu0
        %v590 = vadd.f32 0.0, %v589
        %591 = vmatmul.bf16.gmra.mxu0 %v516
        %v592 = vpop.f32.mrf.mxu0
        %v593 = vadd.f32 0.0, %v592
        %v594 = vpop.f32.mrf.mxu0
        %v595 = vadd.f32 0.0, %v594
        %596 = vmatmul.bf16.gmra.mxu0 %v519
        %v597 = vpop.f32.mrf.mxu0
        %v598 = vadd.f32 0.0, %v597
        %v599 = vpop.f32.mrf.mxu0
        %v600 = vadd.f32 0.0, %v599
        %601 = vmatmul.bf16.gmra.mxu0 %v522
        %v602 = vpop.f32.mrf.mxu0
        %v603 = vadd.f32 0.0, %v602
        %v604 = vpop.f32.mrf.mxu0
        %v605 = vadd.f32 0.0, %v604
        %606 = vmatmul.bf16.gmra.mxu0 %v525
        %v607 = vpop.f32.mrf.mxu0
        %v608 = vadd.f32 0.0, %v607
        %v609 = vpop.f32.mrf.mxu0
        %v610 = vadd.f32 0.0, %v609
        %611 = vmatmul.bf16.gmra.mxu0 %v528
        %v612 = vpop.f32.mrf.mxu0
        %v613 = vadd.f32 0.0, %v612
        %v614 = vpop.f32.mrf.mxu0
        %v615 = vadd.f32 0.0, %v614
        %616 = vmatmul.bf16.gmra.mxu0 %v531
        %v617 = vpop.f32.mrf.mxu0
        %v618 = vadd.f32 0.0, %v617
        %v619 = vpop.f32.mrf.mxu0
        %v620 = vadd.f32 0.0, %v619
        %621 = vdwg.mxu0
        %v622 = vadd.f32 %v316, %v543
        %v623 = vadd.f32 %v317, %v545
        %v624 = vadd.f32 %v318, %v548
        %v625 = vadd.f32 %v319, %v550
        %v626 = vadd.f32 %v320, %v553
        %v627 = vadd.f32 %v321, %v555
        %v628 = vadd.f32 %v322, %v558
        %v629 = vadd.f32 %v323, %v560
        %v630 = vadd.f32 %v324, %v563
        %v631 = vadd.f32 %v325, %v565
        %v632 = vadd.f32 %v326, %v568
        %v633 = vadd.f32 %v327, %v570
        %v634 = vadd.f32 %v328, %v573
        %v635 = vadd.f32 %v329, %v575
        %v636 = vadd.f32 %v330, %v578
        %v637 = vadd.f32 %v331, %v580
        %v638 = vadd.f32 %v332, %v583
        %v639 = vadd.f32 %v333, %v585
        %v640 = vadd.f32 %v334, %v588
        %v641 = vadd.f32 %v335, %v590
        %v642 = vadd.f32 %v336, %v593
        %v643 = vadd.f32 %v337, %v595
        %v644 = vadd.f32 %v338, %v598
        %v645 = vadd.f32 %v339, %v600
        %v646 = vadd.f32 %v340, %v603
        %v647 = vadd.f32 %v341, %v605
        %v648 = vadd.f32 %v342, %v608
        %v649 = vadd.f32 %v343, %v610
        %v650 = vadd.f32 %v344, %v613
        %v651 = vadd.f32 %v345, %v615
        %v652 = vadd.f32 %v346, %v618
        %v653 = vadd.f32 %v347, %v620
        %654 = vst [vmem:[#allocation2] sm:$0xff] %v622
        %655 = vst [vmem:[#allocation2 + $0x8] sm:$0xff] %v623
        %656 = vst [vmem:[#allocation2 + $0x10] sm:$0xff] %v624
        %657 = vst [vmem:[#allocation2 + $0x18] sm:$0xff] %v625
        %658 = vst [vmem:[#allocation2 + $0x20] sm:$0xff] %v626
        %659 = vst [vmem:[#allocation2 + $0x28] sm:$0xff] %v627
        %660 = vst [vmem:[#allocation2 + $0x30] sm:$0xff] %v628
        %661 = vst [vmem:[#allocation2 + $0x38] sm:$0xff] %v629
        %662 = vst [vmem:[#allocation2 + $0x40] sm:$0xff] %v630
        %663 = vst [vmem:[#allocation2 + $0x48] sm:$0xff] %v631
        %664 = vst [vmem:[#allocation2 + $0x50] sm:$0xff] %v632
        %665 = vst [vmem:[#allocation2 + $0x58] sm:$0xff] %v633
        %666 = vst [vmem:[#allocation2 + $0x60] sm:$0xff] %v634
        %667 = vst [vmem:[#allocation2 + $0x68] sm:$0xff] %v635
        %668 = vst [vmem:[#allocation2 + $0x70] sm:$0xff] %v636
        %669 = vst [vmem:[#allocation2 + $0x78] sm:$0xff] %v637
        %670 = vst [vmem:[#allocation2 + $0x80] sm:$0xff] %v638
        %671 = vst [vmem:[#allocation2 + $0x88] sm:$0xff] %v639
        %672 = vst [vmem:[#allocation2 + $0x90] sm:$0xff] %v640
        %673 = vst [vmem:[#allocation2 + $0x98] sm:$0xff] %v641
        %674 = vst [vmem:[#allocation2 + $0xa0] sm:$0xff] %v642
        %675 = vst [vmem:[#allocation2 + $0xa8] sm:$0xff] %v643
        %676 = vst [vmem:[#allocation2 + $0xb0] sm:$0xff] %v644
        %677 = vst [vmem:[#allocation2 + $0xb8] sm:$0xff] %v645
        %678 = vst [vmem:[#allocation2 + $0xc0] sm:$0xff] %v646
        %679 = vst [vmem:[#allocation2 + $0xc8] sm:$0xff] %v647
        %680 = vst [vmem:[#allocation2 + $0xd0] sm:$0xff] %v648
        %681 = vst [vmem:[#allocation2 + $0xd8] sm:$0xff] %v649
        %682 = vst [vmem:[#allocation2 + $0xe0] sm:$0xff] %v650
        %683 = vst [vmem:[#allocation2 + $0xe8] sm:$0xff] %v651
        %684 = vst [vmem:[#allocation2 + $0xf0] sm:$0xff] %v652
        %685 = vst [vmem:[#allocation2 + $0xf8] sm:$0xff] %v653
        // Predicated region
        $region41: #{tpu_custom_call.1} parent=35 // pred_check
          %p686 = pneg %p280
        $region42: #{tpu_custom_call.1} parent=35 // pred_check_branch
          %688 = sbr.rel (%p686) target = $region44
        $region43: #{tpu_custom_call.1} parent=35 // pred_region
          %v689 = vld [vmem:[#allocation2] sm:$0xff]
          %v690 = vld [vmem:[#allocation2 + $0x8] sm:$0xff]
          %v691 = vld [vmem:[#allocation2 + $0x10] sm:$0xff]
          %v692 = vld [vmem:[#allocation2 + $0x18] sm:$0xff]
          %v693 = vld [vmem:[#allocation2 + $0x20] sm:$0xff]
          %v694 = vld [vmem:[#allocation2 + $0x28] sm:$0xff]
          %v695 = vld [vmem:[#allocation2 + $0x30] sm:$0xff]
          %v696 = vld [vmem:[#allocation2 + $0x38] sm:$0xff]
          %v697 = vld [vmem:[#allocation2 + $0x40] sm:$0xff]
          %v698 = vld [vmem:[#allocation2 + $0x48] sm:$0xff]
          %v699 = vld [vmem:[#allocation2 + $0x50] sm:$0xff]
          %v700 = vld [vmem:[#allocation2 + $0x58] sm:$0xff]
          %v701 = vld [vmem:[#allocation2 + $0x60] sm:$0xff]
          %v702 = vld [vmem:[#allocation2 + $0x68] sm:$0xff]
          %v703 = vld [vmem:[#allocation2 + $0x70] sm:$0xff]
          %v704 = vld [vmem:[#allocation2 + $0x78] sm:$0xff]
          %v705 = vld [vmem:[#allocation2 + $0x80] sm:$0xff]
          %v706 = vld [vmem:[#allocation2 + $0x88] sm:$0xff]
          %v707 = vld [vmem:[#allocation2 + $0x90] sm:$0xff]
          %v708 = vld [vmem:[#allocation2 + $0x98] sm:$0xff]
          %v709 = vld [vmem:[#allocation2 + $0xa0] sm:$0xff]
          %v710 = vld [vmem:[#allocation2 + $0xa8] sm:$0xff]
          %v711 = vld [vmem:[#allocation2 + $0xb0] sm:$0xff]
          %v712 = vld [vmem:[#allocation2 + $0xb8] sm:$0xff]
          %v713 = vld [vmem:[#allocation2 + $0xc0] sm:$0xff]
          %v714 = vld [vmem:[#allocation2 + $0xc8] sm:$0xff]
          %v715 = vld [vmem:[#allocation2 + $0xd0] sm:$0xff]
          %v716 = vld [vmem:[#allocation2 + $0xd8] sm:$0xff]
          %v717 = vld [vmem:[#allocation2 + $0xe0] sm:$0xff]
          %v718 = vld [vmem:[#allocation2 + $0xe8] sm:$0xff]
          %v719 = vld [vmem:[#allocation2 + $0xf0] sm:$0xff]
          %v720 = vld [vmem:[#allocation2 + $0xf8] sm:$0xff]
          %s721 = sld [smem:[#allocation3]]
          %v722 = vstv %s721
          %v723 = vmul.f32 %v689, %v722
          %v724 = vmul.f32 %v690, %v722
          %v725 = vmul.f32 %v691, %v722
          %v726 = vmul.f32 %v692, %v722
          %v727 = vmul.f32 %v693, %v722
          %v728 = vmul.f32 %v694, %v722
          %v729 = vmul.f32 %v695, %v722
          %v730 = vmul.f32 %v696, %v722
          %v731 = vmul.f32 %v697, %v722
          %v732 = vmul.f32 %v698, %v722
          %v733 = vmul.f32 %v699, %v722
          %v734 = vmul.f32 %v700, %v722
          %v735 = vmul.f32 %v701, %v722
          %v736 = vmul.f32 %v702, %v722
          %v737 = vmul.f32 %v703, %v722
          %v738 = vmul.f32 %v704, %v722
          %v739 = vmul.f32 %v705, %v722
          %v740 = vmul.f32 %v706, %v722
          %v741 = vmul.f32 %v707, %v722
          %v742 = vmul.f32 %v708, %v722
          %v743 = vmul.f32 %v709, %v722
          %v744 = vmul.f32 %v710, %v722
          %v745 = vmul.f32 %v711, %v722
          %v746 = vmul.f32 %v712, %v722
          %v747 = vmul.f32 %v713, %v722
          %v748 = vmul.f32 %v714, %v722
          %v749 = vmul.f32 %v715, %v722
          %v750 = vmul.f32 %v716, %v722
          %v751 = vmul.f32 %v717, %v722
          %v752 = vmul.f32 %v718, %v722
          %v753 = vmul.f32 %v719, %v722
          %v754 = vmul.f32 %v720, %v722
          %v755 = vld [vmem:[%s277] sm:$0x1]
          %v757 = vperm.slane %v755, 0
          %v759 = vadd.f32 %v723, %v757
          %v760 = vadd.f32 %v724, %v757
          %v761 = vadd.f32 %v725, %v757
          %v762 = vadd.f32 %v726, %v757
          %v763 = vadd.f32 %v727, %v757
          %v764 = vadd.f32 %v728, %v757
          %v765 = vadd.f32 %v729, %v757
          %v766 = vadd.f32 %v730, %v757
          %v767 = vadd.f32 %v731, %v757
          %v768 = vadd.f32 %v732, %v757
          %v769 = vadd.f32 %v733, %v757
          %v770 = vadd.f32 %v734, %v757
          %v771 = vadd.f32 %v735, %v757
          %v772 = vadd.f32 %v736, %v757
          %v773 = vadd.f32 %v737, %v757
          %v774 = vadd.f32 %v738, %v757
          %v775 = vadd.f32 %v739, %v757
          %v776 = vadd.f32 %v740, %v757
          %v777 = vadd.f32 %v741, %v757
          %v778 = vadd.f32 %v742, %v757
          %v779 = vadd.f32 %v743, %v757
          %v780 = vadd.f32 %v744, %v757
          %v781 = vadd.f32 %v745, %v757
          %v782 = vadd.f32 %v746, %v757
          %v783 = vadd.f32 %v747, %v757
          %v784 = vadd.f32 %v748, %v757
          %v785 = vadd.f32 %v749, %v757
          %v786 = vadd.f32 %v750, %v757
          %v787 = vadd.f32 %v751, %v757
          %v788 = vadd.f32 %v752, %v757
          %v789 = vadd.f32 %v753, %v757
          %v790 = vadd.f32 %v754, %v757
          %791 = vst [vmem:[%s256] sm:$0xff] %v759
          %792 = vst [vmem:[%s256 + $0x8] sm:$0xff] %v760
          %793 = vst [vmem:[%s256 + $0x10] sm:$0xff] %v761
          %794 = vst [vmem:[%s256 + $0x18] sm:$0xff] %v762
          %795 = vst [vmem:[%s256 + $0x20] sm:$0xff] %v763
          %796 = vst [vmem:[%s256 + $0x28] sm:$0xff] %v764
          %797 = vst [vmem:[%s256 + $0x30] sm:$0xff] %v765
          %798 = vst [vmem:[%s256 + $0x38] sm:$0xff] %v766
          %799 = vst [vmem:[%s256 + $0x40] sm:$0xff] %v767
          %800 = vst [vmem:[%s256 + $0x48] sm:$0xff] %v768
          %801 = vst [vmem:[%s256 + $0x50] sm:$0xff] %v769
          %802 = vst [vmem:[%s256 + $0x58] sm:$0xff] %v770
          %803 = vst [vmem:[%s256 + $0x60] sm:$0xff] %v771
          %804 = vst [vmem:[%s256 + $0x68] sm:$0xff] %v772
          %805 = vst [vmem:[%s256 + $0x70] sm:$0xff] %v773
          %806 = vst [vmem:[%s256 + $0x78] sm:$0xff] %v774
          %807 = vst [vmem:[%s256 + $0x80] sm:$0xff] %v775
          %808 = vst [vmem:[%s256 + $0x88] sm:$0xff] %v776
          %809 = vst [vmem:[%s256 + $0x90] sm:$0xff] %v777
          %810 = vst [vmem:[%s256 + $0x98] sm:$0xff] %v778
          %811 = vst [vmem:[%s256 + $0xa0] sm:$0xff] %v779
          %812 = vst [vmem:[%s256 + $0xa8] sm:$0xff] %v780
          %813 = vst [vmem:[%s256 + $0xb0] sm:$0xff] %v781
          %814 = vst [vmem:[%s256 + $0xb8] sm:$0xff] %v782
          %815 = vst [vmem:[%s256 + $0xc0] sm:$0xff] %v783
          %816 = vst [vmem:[%s256 + $0xc8] sm:$0xff] %v784
          %817 = vst [vmem:[%s256 + $0xd0] sm:$0xff] %v785
          %818 = vst [vmem:[%s256 + $0xd8] sm:$0xff] %v786
          %819 = vst [vmem:[%s256 + $0xe0] sm:$0xff] %v787
          %820 = vst [vmem:[%s256 + $0xe8] sm:$0xff] %v788
          %821 = vst [vmem:[%s256 + $0xf0] sm:$0xff] %v789
          %822 = vst [vmem:[%s256 + $0xf8] sm:$0xff] %v790
        $region44: #{tpu_custom_call.1} parent=35 // pred_fallthru
          _
        %s823 = sand.u32 %s151, 1
        %s824 = scalar_lea.sflag [#allocation5], %s823
        %s825 = sand.u32 %s151, 1
        %s826 = smul.addr %s825, 256
        %s827 = scalar_lea.vmem [#allocation4], %s826
        // Predicated region
        $region45: #{tpu_custom_call.1} parent=35 // pred_check
          %p828 = pneg %p161
        $region46: #{tpu_custom_call.1} parent=35 // pred_check_branch
          %830 = sbr.rel (%p828) target = $region48
        $region47: #{tpu_custom_call.1} parent=35 // pred_region
          %s831 = smul.u32 32, %s24
          %833 = vsyncadd %s824, 0
          %s834 = sadd.s32 %s25, %s831
          %s835 = smul.addr %s834, 8
          %s836 = scalar_lea.hbm %s4, %s835
          %s837 = sshll.u32 %s827, 4
          %s838 = int_to_ptr.vmem [resolvable:$true] %s837
          %s839 = sshll.u32 %s836, 4
          %s840 = int_to_ptr.hbm [resolvable:$true] %s839
          %845 = dma.vmem_to_hbm [thread:$0]  %s838, 4096, %s840, %s824, 128, 128, 8
        $region48: #{tpu_custom_call.1} parent=35 // pred_fallthru
          _
      $region36: #{tpu_custom_call.1} parent=5 // pred_fallthru
        _
      %p846 = scmp.le.s32.totalorder 2, %s14
      // Predicated region
      $region49: #{tpu_custom_call.1} parent=5 // pred_check
        %p847 = pneg %p846
      $region50: #{tpu_custom_call.1} parent=5 // pred_check_branch
        %849 = sbr.rel (%p847) target = $region52
      $region51: #{tpu_custom_call.1} parent=5 // pred_region
        %s850 = ssub.s32 %s14, 2
        // Predicated region
        $region53: #{tpu_custom_call.1} parent=51 // pred_check
          %p851 = pneg %p167
        $region54: #{tpu_custom_call.1} parent=51 // pred_check_branch
          %853 = sbr.rel (%p851) target = $region56
        $region55: #{tpu_custom_call.1} parent=51 // pred_region
          %s854 = sand.u32 %s152, 1
          %s855 = scalar_lea.sflag [#allocation5], %s854
          %s856 = sand.u32 %s152, 1
          %s857 = smul.addr %s856, 256
          %s858 = scalar_lea.vmem [#allocation4], %s857
          %860 = dma.done %s855, 4096
        $region56: #{tpu_custom_call.1} parent=51 // pred_fallthru
          _
      $region52: #{tpu_custom_call.1} parent=5 // pred_fallthru
        _
    $region6: #{tpu_custom_call.1} parent=1 // loop_footer
      %s18 = sadd.s32 1, %s14
    $region7: #{tpu_custom_call.1} parent=1 // loop_footer_branch
      %13 = sbr.rel target = $region3
    $region8: #{tpu_custom_call.1} parent=1 // loop_exit
      _
    %861 = vsyncpa [#allocation5], 1
    %s862 = scalar_lea.sflag [#allocation5], 1
    %863 = vsyncpa %s862, 1

</llo_original>
